<compile_context>
chip_gen: v7x
topology: tpu7x:2x2x1
jax: 0.10.0
libtpu: 0.0.40
codegen_flags: <defaults>
</compile_context>

<pallas_src>
import functools
import math

import jax
import jax.numpy as jnp
from jax import lax
from jax.experimental import pallas as pl
from jax.experimental.pallas import tpu as pltpu


_BISECT_ITERS = 40                   # tau bisection iterations (f32-exact by ~25)
_LANE_TILE_CAP = 2048                # max lanes per grid step (entmax kernel)
_BATCH_TILE_CAP = 512                # max batch rows per grid step (fused kernel)
_VMEM_BUDGET = 24 * 1024 * 1024      # per-step working-set target
_VMEM_LIMIT = 48 * 1024 * 1024       # scoped VMEM limit, safe on v5e/v6e/v7x


# ---------------------------------------------------------------------------
# Kernel 1: Entmax15 (the ODST choice function) along the leading axis.
# ---------------------------------------------------------------------------
def _entmax15_kernel(x_ref, o_ref, *, n_iter):
    """Entmax-1.5 along axis 0 of a (D, TN) block; rows live on lanes.

    Matches Entmax15Function.forward: x <- (x - max) / 2, find tau such that
    sum_j relu(x_j - tau)^2 == 1 (bisection on [-1, 0]; the sort/cumsum
    closed-form threshold is the unique root), out = relu(x - tau)^2.
    """
    x = x_ref[...].astype(jnp.float32)
    x = (x - jnp.max(x, axis=0, keepdims=True)) * 0.5          # max(x) == 0
    tn = x.shape[1]
    lo = jnp.full((1, tn), -1.0, dtype=jnp.float32)             # f(lo) >= 0
    hi = jnp.zeros((1, tn), dtype=jnp.float32)                  # f(hi) == -1

    def body(_, carry):
        lo_c, hi_c = carry
        mid = 0.5 * (lo_c + hi_c)
        f = jnp.sum(jnp.square(jnp.maximum(x - mid, 0.0)), axis=0,
                    keepdims=True) - 1.0
        go_up = f >= 0.0
        return jnp.where(go_up, mid, lo_c), jnp.where(go_up, hi_c, mid)

    lo, hi = lax.fori_loop(0, n_iter, body, (lo, hi))
    tau = 0.5 * (lo + hi)
    o_ref[...] = jnp.square(jnp.maximum(x - tau, 0.0)).astype(o_ref.dtype)


@functools.partial(jax.jit, static_argnames=("dim",))
def entmax15(x, dim=-1):
    """Entmax-1.5 along `dim`, any shape / dtype (ODST uses dim=0)."""
    orig_dtype = x.dtype
    xm = jnp.moveaxis(x, dim, 0)
    d = xm.shape[0]
    lead = xm.shape[1:]
    r = math.prod(lead) if lead else 1
    x2 = xm.reshape(d, r)            # reduction on sublanes, rows on lanes

    itemsize = jnp.dtype(orig_dtype).itemsize
    bytes_per_lane = d * (4 * itemsize + 2 * 4) + 64
    tn = _VMEM_BUDGET // max(bytes_per_lane, 1)
    tn = max(128, min(_LANE_TILE_CAP, (tn // 128) * 128))
    if r <= tn:
        tn = r                       # single full block
    grid = (pl.cdiv(r, tn),)         # tail block handled by masked stores

    cost = pl.CostEstimate(
        flops=int(5 * d * r * _BISECT_ITERS),
        transcendentals=0,
        bytes_accessed=int(2 * d * r * itemsize))

    out2 = pl.pallas_call(
        functools.partial(_entmax15_kernel, n_iter=_BISECT_ITERS),
        out_shape=jax.ShapeDtypeStruct((d, r), orig_dtype),
        grid_spec=pltpu.PrefetchScalarGridSpec(
            num_scalar_prefetch=0,
            grid=grid,
            in_specs=[pl.BlockSpec((d, tn), lambda i: (0, i))],
            out_specs=pl.BlockSpec((d, tn), lambda i: (0, i)),
        ),
        compiler_params=pltpu.CompilerParams(
            dimension_semantics=("parallel",),
            vmem_limit_bytes=_VMEM_LIMIT,
        ),
        cost_estimate=cost,
    )(x2)

    out = out2.reshape((d,) + lead)
    return jnp.moveaxis(out, 0, dim)


# ---------------------------------------------------------------------------
# Kernel 2: fused ODST forward (selection matmul -> Entmoid15 -> leaf product
#           -> response contraction), tiled over the batch axis.
# ---------------------------------------------------------------------------
def _entmoid15(x):
    """Entmoid15(x) == Entmax15([x, 0])[0]; matches the torch-scripted forward."""
    ax = jnp.abs(x)
    tau = 0.5 * (ax + jnp.sqrt(jnp.maximum(8.0 - ax * ax, 0.0)))
    tau = jnp.where(tau <= ax, 2.0, tau)
    y_neg = 0.25 * jnp.square(jnp.maximum(tau - ax, 0.0))
    return jnp.where(x >= 0.0, 1.0 - y_neg, y_neg)


def _odst_forward_kernel(x_ref, sel_ref, bias_ref, codes_ref, resp_ref, o_ref,
                         *, depth, num_trees):
    # Threshold logits for every (split, tree): one MXU matmul + bias.
    # Column ordering of sel/bias is depth-major: col = d * num_trees + n.
    x = x_ref[...].astype(jnp.float32)                    # (TB, F)
    tl = jnp.dot(x, sel_ref[...],
                 preferred_element_type=jnp.float32) + bias_ref[...]
    y = _entmoid15(tl)                                    # (TB, depth*num_trees)
    # Entmoid15(-x) == 1 - Entmoid15(x) exactly, so one evaluation suffices.

    codes = codes_ref[...]                                # (depth, 2**depth) 0/1
    n = num_trees
    w = None                                              # leaf weights (TB, N, C)
    for d in range(depth):
        yd = y[:, d * n:(d + 1) * n][:, :, None]          # (TB, N, 1)
        c_d = codes[d].reshape(1, 1, -1)                  # (1, 1, C)
        factor = yd + c_d * (1.0 - 2.0 * yd)              # bit ? (1 - y) : y
        w = factor if w is None else w * factor

    t_dim = resp_ref.shape[0]
    for t in range(t_dim):
        resp_t = resp_ref[t]                              # (N, C)
        o_ref[t, :, :] = jnp.sum(w * resp_t[None, :, :],
                                 axis=-1).astype(o_ref.dtype)


@functools.partial(jax.jit, static_argnames=("flatten_output", "batch_tile"))
def odst_forward(x, feature_selection_logits, feature_thresholds,
                 log_temperatures, response, flatten_output=True,
                 batch_tile=None):
    """ODST.forward (post-initialization) with Pallas TPU kernels."""
    orig_shape = x.shape
    if x.ndim > 2:
        x = x.reshape(-1, x.shape[-1])
    b, f = x.shape
    f2, n, d = feature_selection_logits.shape
    assert f2 == f, "input feature dim must match feature_selection_logits"
    n2, t, c = response.shape
    assert n2 == n and c == 2 ** d, "response must be [trees, tree_dim, 2**depth]"

    # 1. Choice function (entmax-1.5 over the feature axis) — Pallas kernel.
    selectors = entmax15(feature_selection_logits, dim=0)      # (F, N, D)

    # 2. Fold exp(-log_temperatures) and the threshold bias into the selection
    #    matmul; lay (tree, split) out depth-major for contiguous lane slices.
    inv_temp = jnp.exp(-log_temperatures.astype(jnp.float32))  # (N, D)
    sel_scaled = (selectors.astype(jnp.float32) * inv_temp[None]
                  ).transpose(0, 2, 1).reshape(f, d * n)       # (F, D*N)
    bias = (-feature_thresholds.astype(jnp.float32) * inv_temp
            ).T.reshape(1, d * n)                              # (1, D*N)

    # 3. Leaf bit codes: codes[d, c] = (c // 2**d) % 2, as float 0/1.
    leaf = jnp.arange(c, dtype=jnp.int32)
    offs = (2 ** jnp.arange(d, dtype=jnp.int32))[:, None]
    codes = ((leaf[None, :] // offs) % 2).astype(jnp.float32)  # (D, C)

    resp_t = jnp.transpose(response, (1, 0, 2)).astype(jnp.float32)  # (T, N, C)

    # Batch tile sized against a VMEM working-set budget.
    in_isize = jnp.dtype(x.dtype).itemsize
    if batch_tile is None:
        bytes_per_row = (2 * f * in_isize + 2 * t * n * in_isize
                         + 3 * d * n * 4 + 2 * n * c * 4)
        tb = _VMEM_BUDGET // max(bytes_per_row, 1)
        tb = max(8, min(_BATCH_TILE_CAP, (tb // 8) * 8))
    else:
        tb = max(8, (int(batch_tile) // 8) * 8)
    if b <= tb:
        tb = b
    grid = (pl.cdiv(b, tb),)

    cost = pl.CostEstimate(
        flops=int(2 * b * f * d * n + 12 * b * d * n
                  + 4 * b * n * c * d + 2 * b * n * c * t),
        transcendentals=int(b * d * n),
        bytes_accessed=int(b * f * in_isize + b * n * t * in_isize
                           + 4 * (f * d * n + d * n + d * c + t * n * c)))

    out = pl.pallas_call(
        functools.partial(_odst_forward_kernel, depth=d, num_trees=n),
        out_shape=jax.ShapeDtypeStruct((t, b, n), x.dtype),
        grid_spec=pltpu.PrefetchScalarGridSpec(
            num_scalar_prefetch=0,
            grid=grid,
            in_specs=[
                pl.BlockSpec((tb, f), lambda i: (i, 0)),         # batch tile
                pl.BlockSpec((f, d * n), lambda i: (0, 0)),      # scaled selectors
                pl.BlockSpec((1, d * n), lambda i: (0, 0)),      # threshold bias
                pl.BlockSpec((d, c), lambda i: (0, 0)),          # leaf bit codes
                pl.BlockSpec((t, n, c), lambda i: (0, 0, 0)),    # responses
            ],
            out_specs=pl.BlockSpec((t, tb, n), lambda i: (0, i, 0)),
        ),
        compiler_params=pltpu.CompilerParams(
            dimension_semantics=("parallel",),
            vmem_limit_bytes=_VMEM_LIMIT,
        ),
        cost_estimate=cost,
    )(x, sel_scaled, bias, codes, resp_t)

    out = jnp.transpose(out, (1, 2, 0))                          # (B, N, T)
    if flatten_output:
        out = out.reshape(b, n * t)
        if len(orig_shape) > 2:
            out = out.reshape(orig_shape[:-1] + (n * t,))
    else:
        if len(orig_shape) > 2:
            out = out.reshape(orig_shape[:-1] + (n, t))
    return out


# ---------------------------------------------------------------------------
# Pure-JAX references mirroring the torch module (for verification only).
# ---------------------------------------------------------------------------
def _entmax15_ref(x, dim=-1):
    xm = jnp.moveaxis(x, dim, -1).astype(jnp.float32)
    xm = (xm - jnp.max(xm, axis=-1, keepdims=True)) * 0.5
    srt = -jnp.sort(-xm, axis=-1)
    d = xm.shape[-1]
    rho = jnp.arange(1, d + 1, dtype=jnp.float32)
    mean = jnp.cumsum(srt, axis=-1) / rho
    mean_sq = jnp.cumsum(srt * srt, axis=-1) / rho
    ss = rho * (mean_sq - mean * mean)
    delta = (1.0 - ss) / rho
    tau = mean - jnp.sqrt(jnp.maximum(delta, 0.0))
    support = jnp.sum((tau <= srt).astype(jnp.int32), axis=-1, keepdims=True)
    tau_star = jnp.take_along_axis(tau, support - 1, axis=-1)
    out = jnp.square(jnp.maximum(xm - tau_star, 0.0))
    return jnp.moveaxis(out, -1, dim).astype(x.dtype)


def _odst_forward_ref(x, logits, thresholds, log_temps, response):
    f, n, d = logits.shape
    _, t, c = response.shape
    sel = _entmax15_ref(logits, dim=0)
    fv = jnp.einsum("bi,ind->bnd", x, sel)
    tl = (fv - thresholds[None]) * jnp.exp(-log_temps)[None]
    bins = _entmoid15(jnp.stack([-tl, tl], axis=-1))             # (B,N,D,2)
    leaf = jnp.arange(c, dtype=jnp.int32)
    offs = (2 ** jnp.arange(d, dtype=jnp.int32))[:, None]
    codes = ((leaf[None, :] // offs) % 2).astype(jnp.float32)    # (D,C)
    codes1 = jnp.stack([codes, 1.0 - codes], axis=-1)            # (D,C,2)
    bm = jnp.einsum("bnds,dcs->bndc", bins, codes1)
    rw = jnp.prod(bm, axis=-2)                                   # (B,N,C)
    out = jnp.einsum("bnc,ntc->bnt", rw, response)
    return out.reshape(x.shape[0], n * t)


if __name__ == "__main__":
    key = jax.random.PRNGKey(0)
    ks = jax.random.split(key, 6)

    # Small ODST configuration: [in_features, num_trees, depth], tree_dim=1.
    in_features, num_trees, depth, tree_dim = 16, 32, 6, 1
    batch = 260

    x = jax.random.normal(ks[0], (batch, in_features), jnp.float32)
    logits = jax.random.uniform(ks[1], (in_features, num_trees, depth),
                                jnp.float32)                     # nn.init.uniform_
    response = jax.random.normal(ks[2], (num_trees, tree_dim, 2 ** depth),
                                 jnp.float32)                    # nn.init.normal_
    # TODO(synk): ODST's data-aware initialize() (np.percentile / Beta sampling
    # on the first batch) is host-side numpy and is not implemented as a kernel;
    # plausible stand-in values are used for thresholds / log-temperatures.
    thresholds = jax.random.normal(ks[3], (num_trees, depth), jnp.float32) * 0.5
    log_temps = jax.random.normal(ks[4], (num_trees, depth), jnp.float32) * 0.1

    ref = _odst_forward_ref(x, logits, thresholds, log_temps, response)

    out = jax.block_until_ready(
        odst_forward(x, logits, thresholds, log_temps, response))
    assert out.shape == (batch, num_trees * tree_dim) and out.dtype == x.dtype
    assert jnp.allclose(out, ref, atol=3e-4), float(jnp.max(jnp.abs(out - ref)))

    # Multi-block grid with a non-dividing tail (masked-store path).
    out_tiled = jax.block_until_ready(
        odst_forward(x, logits, thresholds, log_temps, response, batch_tile=128))
    assert jnp.allclose(out_tiled, ref, atol=3e-4)

    # Choice-function kernel alone vs. the sort-based reference.
    sel = jax.block_until_ready(entmax15(logits, dim=0))
    assert sel.shape == logits.shape and sel.dtype == logits.dtype
    assert jnp.allclose(jnp.sum(sel, axis=0), 1.0, atol=1e-5)
    assert jnp.allclose(sel, _entmax15_ref(logits, dim=0), atol=1e-5)

    # Larger reduction axis / dim=-1 case.
    xb = jax.random.normal(ks[5], (64, 384), jnp.float32) * 2.0
    yb = jax.block_until_ready(entmax15(xb, dim=-1))
    assert jnp.allclose(yb, _entmax15_ref(xb, dim=-1), atol=1e-5)
    assert jnp.allclose(jnp.sum(yb, axis=-1), 1.0, atol=1e-5)

    print("KERNEL_OK")
</pallas_src>

<mosaic_0001>
module attributes {stable_mosaic.version = 11 : i64} {
  func.func @_entmax15_kernel(%arg0: i32, %arg1: memref<16x192xf32, #tpu.memory_space<vmem>>, %arg2: memref<16x192xf32, #tpu.memory_space<vmem>>) attributes {dimension_semantics = [#tpu.dimension_semantics<parallel>], iteration_bounds = array<i64: 1>, scalar_prefetch = 0 : i64, scratch_operands = 0 : i64, tpu.core_type = #tpu.core_type<tc>, window_params = [{transform_indices = @transform_0, window_bounds = array<i64: 16, 192>}, {transform_indices = @transform_1, window_bounds = array<i64: 16, 192>}]} {
    %c0 = arith.constant 0 : index
    %c0_0 = arith.constant 0 : index
    %0 = vector.load %arg1[%c0, %c0_0] : memref<16x192xf32, #tpu.memory_space<vmem>>, vector<16x192xf32>
    %cst = arith.constant dense<0xFF800000> : vector<192xf32>
    %1 = vector.multi_reduction <maximumf>, %0, %cst [0] : vector<16x192xf32> to vector<192xf32>
    %2 = vector.shape_cast %1 : vector<192xf32> to vector<1x192xf32>
    %3 = vector.broadcast %2 : vector<1x192xf32> to vector<16x192xf32>
    %4 = arith.subf %0, %3 : vector<16x192xf32>
    %cst_1 = arith.constant 5.000000e-01 : f32
    %5 = vector.broadcast %cst_1 : f32 to vector<16x192xf32>
    %6 = arith.mulf %4, %5 : vector<16x192xf32>
    %cst_2 = arith.constant -1.000000e+00 : f32
    %7 = vector.broadcast %cst_2 : f32 to vector<1x192xf32>
    %cst_3 = arith.constant 0.000000e+00 : f32
    %8 = vector.broadcast %cst_3 : f32 to vector<1x192xf32>
    %c0_i32 = arith.constant 0 : i32
    %c40_i32 = arith.constant 40 : i32
    %9 = arith.addi %c0_i32, %c40_i32 : i32
    %c1_i32 = arith.constant 1 : i32
    %10:2 = scf.for %arg3 = %c0_i32 to %9 step %c1_i32 iter_args(%arg4 = %7, %arg5 = %8) -> (vector<1x192xf32>, vector<1x192xf32>)  : i32 {
      %20 = arith.addf %arg4, %arg5 : vector<1x192xf32>
      %cst_8 = arith.constant 5.000000e-01 : f32
      %21 = vector.broadcast %cst_8 : f32 to vector<1x192xf32>
      %22 = arith.mulf %21, %20 : vector<1x192xf32>
      %23 = vector.broadcast %22 : vector<1x192xf32> to vector<16x192xf32>
      %24 = arith.subf %6, %23 : vector<16x192xf32>
      %cst_9 = arith.constant 0.000000e+00 : f32
      %25 = vector.broadcast %cst_9 : f32 to vector<16x192xf32>
      %26 = arith.maximumf %24, %25 : vector<16x192xf32>
      %27 = arith.mulf %26, %26 : vector<16x192xf32>
      %cst_10 = arith.constant dense<0.000000e+00> : vector<192xf32>
      %28 = vector.multi_reduction <add>, %27, %cst_10 [0] : vector<16x192xf32> to vector<192xf32>
      %29 = vector.shape_cast %28 : vector<192xf32> to vector<1x192xf32>
      %cst_11 = arith.constant 1.000000e+00 : f32
      %30 = vector.broadcast %cst_11 : f32 to vector<1x192xf32>
      %31 = arith.subf %29, %30 : vector<1x192xf32>
      %cst_12 = arith.constant 0.000000e+00 : f32
      %32 = vector.broadcast %cst_12 : f32 to vector<1x192xf32>
      %33 = arith.cmpf oge, %31, %32 : vector<1x192xf32>
      %34 = arith.select %33, %22, %arg4 : vector<1x192xi1>, vector<1x192xf32>
      %35 = arith.select %33, %arg5, %22 : vector<1x192xi1>, vector<1x192xf32>
      scf.yield %34, %35 : vector<1x192xf32>, vector<1x192xf32>
    }
    %11 = arith.addf %10#0, %10#1 : vector<1x192xf32>
    %cst_4 = arith.constant 5.000000e-01 : f32
    %12 = vector.broadcast %cst_4 : f32 to vector<1x192xf32>
    %13 = arith.mulf %12, %11 : vector<1x192xf32>
    %14 = vector.broadcast %13 : vector<1x192xf32> to vector<16x192xf32>
    %15 = arith.subf %6, %14 : vector<16x192xf32>
    %cst_5 = arith.constant 0.000000e+00 : f32
    %16 = vector.broadcast %cst_5 : f32 to vector<16x192xf32>
    %17 = arith.maximumf %15, %16 : vector<16x192xf32>
    %18 = arith.mulf %17, %17 : vector<16x192xf32>
    %c0_6 = arith.constant 0 : index
    %c0_7 = arith.constant 0 : index
    %19 = vector.load %arg2[%c0_6, %c0_7] : memref<16x192xf32, #tpu.memory_space<vmem>>, vector<16x192xf32>
    tpu.vector_store %arg2[%c0_6, %c0_7], %18 {strides = array<i32>} : memref<16x192xf32, #tpu.memory_space<vmem>>, vector<16x192xf32>,
    return
  }
  func.func @transform_0(%arg0: i32) -> (i32, i32) {
    %c0_i32 = arith.constant 0 : i32
    %c0_i32_0 = arith.constant 0 : i32
    return %c0_i32, %arg0 : i32, i32
  }
  func.func @transform_1(%arg0: i32) -> (i32, i32) {
    %c0_i32 = arith.constant 0 : i32
    %c0_i32_0 = arith.constant 0 : i32
    return %c0_i32, %arg0 : i32, i32
  }
}

</mosaic_0001>

<llo_original>
// kernel: entmax15.1
$region0: #{entmax15.1}
  #allocation0 [shape = 'u32[]', space=smem, size = 0x4, offset = 0x4, fixed_abs, tag = 'smem constant byte address 0x4 - core index']
  #allocation1 [shape = 'u32[144,128]{1,0:T(1,128)}', space=vmem, size = 0x12000, scoped, tag = 'internal scratch']
  %s0 = inlined_call_operand.vmem [shape: f32[16,192], index: 0, kind: input, shape index: {}]
  %s1 = inlined_call_operand.vmem [shape: f32[16,192], index: 1, kind: output, shape index: {}]
  %s2 = sld [smem:[#allocation0]]
  $region21: #{entmax15.1} parent=0
    _
  %s4 = ssub.s32 1, %s2
  %s5 = scalar_select 0, %s4, %s2
  // Predicated region
  $region2: #{entmax15.1} parent=0 // pred_check
    _
  $region3: #{entmax15.1} parent=0 // pred_check_branch
    %7 = sbr.rel (0) target = $region5
  $region4: #{entmax15.1} parent=0 // pred_region
    _
  $region5: #{entmax15.1} parent=0 // pred_fallthru
    _
  %v8 = vld [vmem:[%s0] sm:$0xff]
  %v9 = vld [vmem:[%s0 + $0x8] sm:$0xff]
  %v10 = vld [vmem:[%s0 + $0x10] sm:$0xff]
  %v11 = vld [vmem:[%s0 + $0x18] sm:$0xff]
  %v12 = vmax.f32 %v8, %v10
  %v13 = vrot.slane %v12, 4
  %v14 = vmax.f32 %v12, %v13
  %v15 = vrot.slane %v14, 2
  %v16 = vmax.f32 %v14, %v15
  %v17 = vrot.slane %v16, 1
  %v18 = vmax.f32 %v16, %v17
  %vm19 = vcmask 523264
  %v20 = vsel %vm19, %v9, -inf
  %v21 = vsel %vm19, %v11, -inf
  %v22 = vmax.f32 %v20, %v21
  %v23 = vrot.slane %v22, 4
  %v24 = vmax.f32 %v22, %v23
  %v25 = vrot.slane %v24, 2
  %v26 = vmax.f32 %v24, %v25
  %v27 = vrot.slane %v26, 1
  %v28 = vmax.f32 %v26, %v27
  %v29 = vsub.f32 %v8, %v18
  %v30 = vsub.f32 %v9, %v28
  %v31 = vsub.f32 %v10, %v18
  %v32 = vsub.f32 %v11, %v28
  %v33 = vmul.f32 %v29, 0.5
  %v34 = vmul.f32 %v30, 0.5
  %v35 = vmul.f32 %v31, 0.5
  %v36 = vmul.f32 %v32, 0.5
  loop: start=0, step=1, limit=40
  $region6: #{entmax15.1} parent=0 // loop_pre_header
    _
  $region7: #{entmax15.1} parent=0 // loop_header
    %s38 = sphi 0, %s42
    %p39 = scmp.ge.s32.totalorder %s38, 40
    %v43 = vphi -1.0, %v83
    %v44 = vphi -1.0, %v84
    %v45 = vphi 0.0, %v85
    %v46 = vphi 0.0, %v86
  $region8: #{entmax15.1} parent=0 // loop_header_branch
    %41 = sbr.rel (%p39) target = $region12
  $region9: #{entmax15.1} parent=0 // loop_body
    %v47 = vadd.f32 %v43, %v45
    %v48 = vadd.f32 %v44, %v46
    %v49 = vmul.f32 %v47, 0.5
    %v50 = vmul.f32 %v48, 0.5
    %v51 = vsub.f32 %v33, %v49
    %v52 = vsub.f32 %v34, %v50
    %v53 = vsub.f32 %v35, %v49
    %v54 = vsub.f32 %v36, %v50
    %v55 = vmax.f32 %v51, 0.0
    %v56 = vmax.f32 %v52, 0.0
    %v57 = vmax.f32 %v53, 0.0
    %v58 = vmax.f32 %v54, 0.0
    %v59 = vmul.f32 %v55, %v55
    %v60 = vmul.f32 %v56, %v56
    %v61 = vmul.f32 %v57, %v57
    %v62 = vmul.f32 %v58, %v58
    %v63 = vadd.f32 %v59, %v61
    %v64 = vrot.slane %v63, 4
    %v65 = vadd.f32 %v63, %v64
    %v66 = vrot.slane %v65, 2
    %v67 = vadd.f32 %v65, %v66
    %v68 = vrot.slane %v67, 1
    %v69 = vadd.f32 %v67, %v68
    %v70 = vsel %vm19, %v60, 0.0
    %v71 = vsel %vm19, %v62, 0.0
    %v72 = vadd.f32 %v70, %v71
    %v73 = vrot.slane %v72, 4
    %v74 = vadd.f32 %v72, %v73
    %v75 = vrot.slane %v74, 2
    %v76 = vadd.f32 %v74, %v75
    %v77 = vrot.slane %v76, 1
    %v78 = vadd.f32 %v76, %v77
    %v79 = vsub.f32 %v69, 1.0
    %v80 = vsub.f32 %v78, 1.0
    %vm81 = vcmp.ge.f32.partialorder %v79, 0.0
    %vm82 = vcmp.ge.f32.partialorder %v80, 0.0
    %v83 = vsel %vm81, %v49, %v43
    %v84 = vsel %vm82, %v50, %v44
    %v85 = vsel %vm81, %v45, %v49
    %v86 = vsel %vm82, %v46, %v50
  $region10: #{entmax15.1} parent=0 // loop_footer
    %s42 = sadd.s32 1, %s38
  $region11: #{entmax15.1} parent=0 // loop_footer_branch
    %37 = sbr.rel target = $region7
  $region12: #{entmax15.1} parent=0 // loop_exit
    _
  %v87 = vadd.f32 %v43, %v45
  %v88 = vadd.f32 %v44, %v46
  %v89 = vmul.f32 %v87, 0.5
  %v90 = vmul.f32 %v88, 0.5
  %v91 = vsub.f32 %v33, %v89
  %v92 = vsub.f32 %v34, %v90
  %v93 = vsub.f32 %v35, %v89
  %v94 = vsub.f32 %v36, %v90
  %v95 = vmax.f32 %v91, 0.0
  %v96 = vmax.f32 %v92, 0.0
  %v97 = vmax.f32 %v93, 0.0
  %v98 = vmax.f32 %v94, 0.0
  %v99 = vmul.f32 %v95, %v95
  %v100 = vmul.f32 %v96, %v96
  %v101 = vmul.f32 %v97, %v97
  %v102 = vmul.f32 %v98, %v98
  %103 = vst [vmem:[%s1] sm:$0xff] %v99
  %104 = vst.msk [vmem:[%s1 + $0x8] sm:$0xff] %vm19, %v100
  %105 = vst [vmem:[%s1 + $0x10] sm:$0xff] %v101
  %106 = vst.msk [vmem:[%s1 + $0x18] sm:$0xff] %vm19, %v102
  // Predicated region
  $region13: #{entmax15.1} parent=0 // pred_check
    _
  $region14: #{entmax15.1} parent=0 // pred_check_branch
    %108 = sbr.rel (0) target = $region16
  $region15: #{entmax15.1} parent=0 // pred_region
    _
  $region16: #{entmax15.1} parent=0 // pred_fallthru
    _
  // Predicated region
  $region17: #{entmax15.1} parent=0 // pred_check
    _
  $region18: #{entmax15.1} parent=0 // pred_check_branch
    %110 = sbr.rel (0) target = $region20
  $region19: #{entmax15.1} parent=0 // pred_region
    _
  $region20: #{entmax15.1} parent=0 // pred_fallthru
    _

</llo_original>
